<compile_context>
chip_gen: v7x
topology: tpu7x:2x2x1
jax: 0.10.0
libtpu: 0.0.40
codegen_flags: <defaults>
</compile_context>

<pallas_src>
import jax
import jax.numpy as jnp
from jax.experimental import pallas as pl
from jax.experimental.pallas import tpu as pltpu


def _outer_matmul(a, b):
    """(p, K) @ (K, q) for tiny static K as an unrolled VPU outer-product sum.

    Avoids padded sub-tile MXU matmuls; each term is a lane-broadcast of a
    (p, 1) column times a sublane-broadcast of a (1, q) row.
    """
    K = a.shape[1]
    acc = a[:, 0:1] * b[0:1, :]
    for c in range(1, K):
        acc = acc + a[:, c:c + 1] * b[c:c + 1, :]
    return acc


def _dspo_kernel(y_ref, yt_ref, a_ref, at_ref, h_ref, ht_ref, l_ref, lt_ref,
                 yhat_ref):
    # y_ref:    (m, N)   observations, columns y[:, k]
    # yt_ref:   (N, m)   observations, time-major rows
    # a_ref:    (n, n)   A          at_ref: (n, n) A^T
    # h_ref:    (m, n)   H          ht_ref: (n, m) H^T
    # l_ref:    (n, m)   L (gain)   lt_ref: (m, n) L^T
    # yhat_ref: (N, m)   output, time-major (wrapper transposes to (m, N))
    N = y_ref.shape[1]
    n = a_ref.shape[0]

    A, AT = a_ref[...], at_ref[...]
    H, HT = h_ref[...], ht_ref[...]
    L, LT = l_ref[...], lt_ref[...]
    y, yT = y_ref[...], yt_ref[...]

    # Fold the gain into the transition:  x_{k+1} = (A - L H) x_k + L y_k.
    # All contractions here are over the tiny m dim -> VPU outer-product sums.
    M = A - _outer_matmul(L, H)       # (n, n)
    MT = AT - _outer_matmul(HT, LT)   # (n, n) = M^T
    Ly = _outer_matmul(L, y)          # (n, N)  columns: L @ y[:, k]
    LyT = _outer_matmul(yT, LT)       # (N, n)  rows:    (L @ y[:, k])^T

    # Serial chain.  State carried in BOTH orientations so each step is a
    # single VPU broadcast-multiply plus one small XLU reduce per orientation
    # (no MXU push/pop latency, no per-step transposes on the critical path).
    x_row = jnp.zeros((1, n), jnp.float32)   # xhat_k as a lane row
    x_col = jnp.zeros((n, 1), jnp.float32)   # xhat_k as a sublane column

    rows = [x_row]                           # trajectory xhat_0 .. xhat_{N-1}
    for k in range(N - 1):                   # fully unrolled (static N)
        # col_{k+1}[j] = sum_i M[j, i] * xhat_k[i] + (L y_k)[j]
        new_col = jnp.sum(x_row * M, axis=1, keepdims=True) + Ly[:, k:k + 1]
        # row_{k+1}[j] = sum_i xhat_k[i] * M[j, i] + (L y_k)[j]
        new_row = jnp.sum(x_col * MT, axis=0, keepdims=True) + LyT[k:k + 1, :]
        x_row, x_col = new_row, new_col
        rows.append(x_row)

    X = jnp.concatenate(rows, axis=0)        # (N, n) state trajectory
    # One MXU projection + one full-tile store.
    yhat_ref[...] = jnp.dot(X, HT, preferred_element_type=jnp.float32)
    # TODO(synk): the PyTorch NaN-check / breakpoint() debug branch is
    # host-side control flow with no Pallas equivalent; omitted.


def dspo_forward(y, A, H, L):
    """y: (m, N), A: (n, n), H: (m, n), L: (n, m) -> yhat: (m, N)."""
    m, N = y.shape
    y = jnp.asarray(y, jnp.float32)
    A = jnp.asarray(A, jnp.float32)
    H = jnp.asarray(H, jnp.float32)
    L = jnp.asarray(L, jnp.float32)

    vmem = pl.BlockSpec(memory_space=pltpu.MemorySpace.VMEM)
    yhat_tm = pl.pallas_call(
        _dspo_kernel,
        out_shape=jax.ShapeDtypeStruct((N, m), jnp.float32),
        in_specs=[vmem] * 8,
        out_specs=vmem,
    )(y, y.T, A, A.T, H, H.T, L, L.T)   # transposes = pure layout plumbing
    return yhat_tm.T                    # (m, N), PyTorch layout


def _reference(y, A, H, L):
    """Pure-JAX reference replicating the PyTorch loop (unfolded form)."""
    m, N = y.shape
    n = A.shape[0]
    x = jnp.zeros((n,), jnp.float32)
    yh = []
    for k in range(N):
        yh.append(H @ x)
        x = A @ x + L @ (y[:, k] - H @ x)
    return jnp.stack(yh, axis=1)


if __name__ == "__main__":
    # Small shapes: state dim n=8, observation dim m=4, horizon N=16.
    n, m, N = 8, 4, 16
    key = jax.random.PRNGKey(0)
    k1, k2, k3, k4 = jax.random.split(key, 4)

    # Deterministic "parameters": stable-ish A, H, learned gain L (= conf.initial).
    A = 0.1 * jax.random.normal(k1, (n, n), jnp.float32) + 0.5 * jnp.eye(n, dtype=jnp.float32)
    H = jax.random.normal(k2, (m, n), jnp.float32) * 0.3
    L = jax.random.normal(k3, (n, m), jnp.float32) * 0.1
    y = jax.random.normal(k4, (m, N), jnp.float32)

    fwd = jax.jit(dspo_forward)
    yhat = jax.block_until_ready(fwd(y, A, H, L))

    ref = _reference(y, A, H, L)
    assert yhat.shape == (m, N)
    # Folded (A - L H) recurrence differs from the reference only at f32
    # rounding level.
    assert jnp.allclose(yhat, ref, atol=1e-5, rtol=1e-5)
    print("KERNEL_OK")
</pallas_src>

<mosaic_0001>
module attributes {stable_mosaic.version = 11 : i64} {
  func.func @_dspo_kernel(%arg0: memref<4x16xf32, #tpu.memory_space<vmem>>, %arg1: memref<16x4xf32, #tpu.memory_space<vmem>>, %arg2: memref<8x8xf32, #tpu.memory_space<vmem>>, %arg3: memref<8x8xf32, #tpu.memory_space<vmem>>, %arg4: memref<4x8xf32, #tpu.memory_space<vmem>>, %arg5: memref<8x4xf32, #tpu.memory_space<vmem>>, %arg6: memref<8x4xf32, #tpu.memory_space<vmem>>, %arg7: memref<4x8xf32, #tpu.memory_space<vmem>>, %arg8: memref<16x4xf32, #tpu.memory_space<vmem>>) attributes {dimension_semantics = [], scalar_prefetch = 0 : i64, scratch_operands = 0 : i64, tpu.core_type = #tpu.core_type<tc>} {
    %c0 = arith.constant 0 : index
    %c0_0 = arith.constant 0 : index
    %0 = vector.load %arg2[%c0, %c0_0] : memref<8x8xf32, #tpu.memory_space<vmem>>, vector<8x8xf32>
    %c0_1 = arith.constant 0 : index
    %c0_2 = arith.constant 0 : index
    %1 = vector.load %arg3[%c0_1, %c0_2] : memref<8x8xf32, #tpu.memory_space<vmem>>, vector<8x8xf32>
    %c0_3 = arith.constant 0 : index
    %c0_4 = arith.constant 0 : index
    %2 = vector.load %arg4[%c0_3, %c0_4] : memref<4x8xf32, #tpu.memory_space<vmem>>, vector<4x8xf32>
    %c0_5 = arith.constant 0 : index
    %c0_6 = arith.constant 0 : index
    %3 = vector.load %arg5[%c0_5, %c0_6] : memref<8x4xf32, #tpu.memory_space<vmem>>, vector<8x4xf32>
    %c0_7 = arith.constant 0 : index
    %c0_8 = arith.constant 0 : index
    %4 = vector.load %arg6[%c0_7, %c0_8] : memref<8x4xf32, #tpu.memory_space<vmem>>, vector<8x4xf32>
    %c0_9 = arith.constant 0 : index
    %c0_10 = arith.constant 0 : index
    %5 = vector.load %arg7[%c0_9, %c0_10] : memref<4x8xf32, #tpu.memory_space<vmem>>, vector<4x8xf32>
    %c0_11 = arith.constant 0 : index
    %c0_12 = arith.constant 0 : index
    %6 = vector.load %arg0[%c0_11, %c0_12] : memref<4x16xf32, #tpu.memory_space<vmem>>, vector<4x16xf32>
    %c0_13 = arith.constant 0 : index
    %c0_14 = arith.constant 0 : index
    %7 = vector.load %arg1[%c0_13, %c0_14] : memref<16x4xf32, #tpu.memory_space<vmem>>, vector<16x4xf32>
    %8 = vector.extract_strided_slice %4 {offsets = [0, 0], sizes = [8, 1], strides = [1, 1]} : vector<8x4xf32> to vector<8x1xf32>
    %9 = vector.extract_strided_slice %2 {offsets = [0, 0], sizes = [1, 8], strides = [1, 1]} : vector<4x8xf32> to vector<1x8xf32>
    %10 = vector.broadcast %8 : vector<8x1xf32> to vector<8x8xf32>
    %11 = vector.broadcast %9 : vector<1x8xf32> to vector<8x8xf32>
    %12 = arith.mulf %10, %11 : vector<8x8xf32>
    %13 = vector.extract_strided_slice %4 {offsets = [0, 1], sizes = [8, 1], strides = [1, 1]} : vector<8x4xf32> to vector<8x1xf32>
    %14 = vector.extract_strided_slice %2 {offsets = [1, 0], sizes = [1, 8], strides = [1, 1]} : vector<4x8xf32> to vector<1x8xf32>
    %15 = vector.broadcast %13 : vector<8x1xf32> to vector<8x8xf32>
    %16 = vector.broadcast %14 : vector<1x8xf32> to vector<8x8xf32>
    %17 = arith.mulf %15, %16 : vector<8x8xf32>
    %18 = arith.addf %12, %17 : vector<8x8xf32>
    %19 = vector.extract_strided_slice %4 {offsets = [0, 2], sizes = [8, 1], strides = [1, 1]} : vector<8x4xf32> to vector<8x1xf32>
    %20 = vector.extract_strided_slice %2 {offsets = [2, 0], sizes = [1, 8], strides = [1, 1]} : vector<4x8xf32> to vector<1x8xf32>
    %21 = vector.broadcast %19 : vector<8x1xf32> to vector<8x8xf32>
    %22 = vector.broadcast %20 : vector<1x8xf32> to vector<8x8xf32>
    %23 = arith.mulf %21, %22 : vector<8x8xf32>
    %24 = arith.addf %18, %23 : vector<8x8xf32>
    %25 = vector.extract_strided_slice %4 {offsets = [0, 3], sizes = [8, 1], strides = [1, 1]} : vector<8x4xf32> to vector<8x1xf32>
    %26 = vector.extract_strided_slice %2 {offsets = [3, 0], sizes = [1, 8], strides = [1, 1]} : vector<4x8xf32> to vector<1x8xf32>
    %27 = vector.broadcast %25 : vector<8x1xf32> to vector<8x8xf32>
    %28 = vector.broadcast %26 : vector<1x8xf32> to vector<8x8xf32>
    %29 = arith.mulf %27, %28 : vector<8x8xf32>
    %30 = arith.addf %24, %29 : vector<8x8xf32>
    %31 = arith.subf %0, %30 : vector<8x8xf32>
    %32 = vector.extract_strided_slice %3 {offsets = [0, 0], sizes = [8, 1], strides = [1, 1]} : vector<8x4xf32> to vector<8x1xf32>
    %33 = vector.extract_strided_slice %5 {offsets = [0, 0], sizes = [1, 8], strides = [1, 1]} : vector<4x8xf32> to vector<1x8xf32>
    %34 = vector.broadcast %32 : vector<8x1xf32> to vector<8x8xf32>
    %35 = vector.broadcast %33 : vector<1x8xf32> to vector<8x8xf32>
    %36 = arith.mulf %34, %35 : vector<8x8xf32>
    %37 = vector.extract_strided_slice %3 {offsets = [0, 1], sizes = [8, 1], strides = [1, 1]} : vector<8x4xf32> to vector<8x1xf32>
    %38 = vector.extract_strided_slice %5 {offsets = [1, 0], sizes = [1, 8], strides = [1, 1]} : vector<4x8xf32> to vector<1x8xf32>
    %39 = vector.broadcast %37 : vector<8x1xf32> to vector<8x8xf32>
    %40 = vector.broadcast %38 : vector<1x8xf32> to vector<8x8xf32>
    %41 = arith.mulf %39, %40 : vector<8x8xf32>
    %42 = arith.addf %36, %41 : vector<8x8xf32>
    %43 = vector.extract_strided_slice %3 {offsets = [0, 2], sizes = [8, 1], strides = [1, 1]} : vector<8x4xf32> to vector<8x1xf32>
    %44 = vector.extract_strided_slice %5 {offsets = [2, 0], sizes = [1, 8], strides = [1, 1]} : vector<4x8xf32> to vector<1x8xf32>
    %45 = vector.broadcast %43 : vector<8x1xf32> to vector<8x8xf32>
    %46 = vector.broadcast %44 : vector<1x8xf32> to vector<8x8xf32>
    %47 = arith.mulf %45, %46 : vector<8x8xf32>
    %48 = arith.addf %42, %47 : vector<8x8xf32>
    %49 = vector.extract_strided_slice %3 {offsets = [0, 3], sizes = [8, 1], strides = [1, 1]} : vector<8x4xf32> to vector<8x1xf32>
    %50 = vector.extract_strided_slice %5 {offsets = [3, 0], sizes = [1, 8], strides = [1, 1]} : vector<4x8xf32> to vector<1x8xf32>
    %51 = vector.broadcast %49 : vector<8x1xf32> to vector<8x8xf32>
    %52 = vector.broadcast %50 : vector<1x8xf32> to vector<8x8xf32>
    %53 = arith.mulf %51, %52 : vector<8x8xf32>
    %54 = arith.addf %48, %53 : vector<8x8xf32>
    %55 = arith.subf %1, %54 : vector<8x8xf32>
    %56 = vector.extract_strided_slice %4 {offsets = [0, 0], sizes = [8, 1], strides = [1, 1]} : vector<8x4xf32> to vector<8x1xf32>
    %57 = vector.extract_strided_slice %6 {offsets = [0, 0], sizes = [1, 16], strides = [1, 1]} : vector<4x16xf32> to vector<1x16xf32>
    %58 = vector.broadcast %56 : vector<8x1xf32> to vector<8x16xf32>
    %59 = vector.broadcast %57 : vector<1x16xf32> to vector<8x16xf32>
    %60 = arith.mulf %58, %59 : vector<8x16xf32>
    %61 = vector.extract_strided_slice %4 {offsets = [0, 1], sizes = [8, 1], strides = [1, 1]} : vector<8x4xf32> to vector<8x1xf32>
    %62 = vector.extract_strided_slice %6 {offsets = [1, 0], sizes = [1, 16], strides = [1, 1]} : vector<4x16xf32> to vector<1x16xf32>
    %63 = vector.broadcast %61 : vector<8x1xf32> to vector<8x16xf32>
    %64 = vector.broadcast %62 : vector<1x16xf32> to vector<8x16xf32>
    %65 = arith.mulf %63, %64 : vector<8x16xf32>
    %66 = arith.addf %60, %65 : vector<8x16xf32>
    %67 = vector.extract_strided_slice %4 {offsets = [0, 2], sizes = [8, 1], strides = [1, 1]} : vector<8x4xf32> to vector<8x1xf32>
    %68 = vector.extract_strided_slice %6 {offsets = [2, 0], sizes = [1, 16], strides = [1, 1]} : vector<4x16xf32> to vector<1x16xf32>
    %69 = vector.broadcast %67 : vector<8x1xf32> to vector<8x16xf32>
    %70 = vector.broadcast %68 : vector<1x16xf32> to vector<8x16xf32>
    %71 = arith.mulf %69, %70 : vector<8x16xf32>
    %72 = arith.addf %66, %71 : vector<8x16xf32>
    %73 = vector.extract_strided_slice %4 {offsets = [0, 3], sizes = [8, 1], strides = [1, 1]} : vector<8x4xf32> to vector<8x1xf32>
    %74 = vector.extract_strided_slice %6 {offsets = [3, 0], sizes = [1, 16], strides = [1, 1]} : vector<4x16xf32> to vector<1x16xf32>
    %75 = vector.broadcast %73 : vector<8x1xf32> to vector<8x16xf32>
    %76 = vector.broadcast %74 : vector<1x16xf32> to vector<8x16xf32>
    %77 = arith.mulf %75, %76 : vector<8x16xf32>
    %78 = arith.addf %72, %77 : vector<8x16xf32>
    %79 = vector.extract_strided_slice %7 {offsets = [0, 0], sizes = [16, 1], strides = [1, 1]} : vector<16x4xf32> to vector<16x1xf32>
    %80 = vector.extract_strided_slice %5 {offsets = [0, 0], sizes = [1, 8], strides = [1, 1]} : vector<4x8xf32> to vector<1x8xf32>
    %81 = vector.broadcast %79 : vector<16x1xf32> to vector<16x8xf32>
    %82 = vector.broadcast %80 : vector<1x8xf32> to vector<16x8xf32>
    %83 = arith.mulf %81, %82 : vector<16x8xf32>
    %84 = vector.extract_strided_slice %7 {offsets = [0, 1], sizes = [16, 1], strides = [1, 1]} : vector<16x4xf32> to vector<16x1xf32>
    %85 = vector.extract_strided_slice %5 {offsets = [1, 0], sizes = [1, 8], strides = [1, 1]} : vector<4x8xf32> to vector<1x8xf32>
    %86 = vector.broadcast %84 : vector<16x1xf32> to vector<16x8xf32>
    %87 = vector.broadcast %85 : vector<1x8xf32> to vector<16x8xf32>
    %88 = arith.mulf %86, %87 : vector<16x8xf32>
    %89 = arith.addf %83, %88 : vector<16x8xf32>
    %90 = vector.extract_strided_slice %7 {offsets = [0, 2], sizes = [16, 1], strides = [1, 1]} : vector<16x4xf32> to vector<16x1xf32>
    %91 = vector.extract_strided_slice %5 {offsets = [2, 0], sizes = [1, 8], strides = [1, 1]} : vector<4x8xf32> to vector<1x8xf32>
    %92 = vector.broadcast %90 : vector<16x1xf32> to vector<16x8xf32>
    %93 = vector.broadcast %91 : vector<1x8xf32> to vector<16x8xf32>
    %94 = arith.mulf %92, %93 : vector<16x8xf32>
    %95 = arith.addf %89, %94 : vector<16x8xf32>
    %96 = vector.extract_strided_slice %7 {offsets = [0, 3], sizes = [16, 1], strides = [1, 1]} : vector<16x4xf32> to vector<16x1xf32>
    %97 = vector.extract_strided_slice %5 {offsets = [3, 0], sizes = [1, 8], strides = [1, 1]} : vector<4x8xf32> to vector<1x8xf32>
    %98 = vector.broadcast %96 : vector<16x1xf32> to vector<16x8xf32>
    %99 = vector.broadcast %97 : vector<1x8xf32> to vector<16x8xf32>
    %100 = arith.mulf %98, %99 : vector<16x8xf32>
    %101 = arith.addf %95, %100 : vector<16x8xf32>
    %cst = arith.constant 0.000000e+00 : f32
    %102 = vector.broadcast %cst : f32 to vector<1x8xf32>
    %cst_15 = arith.constant 0.000000e+00 : f32
    %103 = vector.broadcast %cst_15 : f32 to vector<8x1xf32>
    %104 = vector.broadcast %102 : vector<1x8xf32> to vector<8x8xf32>
    %105 = arith.mulf %104, %31 : vector<8x8xf32>
    %cst_16 = arith.constant dense<0.000000e+00> : vector<8xf32>
    %106 = vector.multi_reduction <add>, %105, %cst_16 [1] : vector<8x8xf32> to vector<8xf32>
    %107 = vector.shape_cast %106 : vector<8xf32> to vector<8x1xf32>
    %108 = vector.extract_strided_slice %78 {offsets = [0, 0], sizes = [8, 1], strides = [1, 1]} : vector<8x16xf32> to vector<8x1xf32>
    %109 = arith.addf %107, %108 : vector<8x1xf32>
    %110 = vector.broadcast %103 : vector<8x1xf32> to vector<8x8xf32>
    %111 = arith.mulf %110, %55 : vector<8x8xf32>
    %cst_17 = arith.constant dense<0.000000e+00> : vector<8xf32>
    %112 = vector.multi_reduction <add>, %111, %cst_17 [0] : vector<8x8xf32> to vector<8xf32>
    %113 = vector.shape_cast %112 : vector<8xf32> to vector<1x8xf32>
    %114 = vector.extract_strided_slice %101 {offsets = [0, 0], sizes = [1, 8], strides = [1, 1]} : vector<16x8xf32> to vector<1x8xf32>
    %115 = arith.addf %113, %114 : vector<1x8xf32>
    %116 = vector.broadcast %115 : vector<1x8xf32> to vector<8x8xf32>
    %117 = arith.mulf %116, %31 : vector<8x8xf32>
    %cst_18 = arith.constant dense<0.000000e+00> : vector<8xf32>
    %118 = vector.multi_reduction <add>, %117, %cst_18 [1] : vector<8x8xf32> to vector<8xf32>
    %119 = vector.shape_cast %118 : vector<8xf32> to vector<8x1xf32>
    %120 = vector.extract_strided_slice %78 {offsets = [0, 1], sizes = [8, 1], strides = [1, 1]} : vector<8x16xf32> to vector<8x1xf32>
    %121 = arith.addf %119, %120 : vector<8x1xf32>
    %122 = vector.broadcast %109 : vector<8x1xf32> to vector<8x8xf32>
    %123 = arith.mulf %122, %55 : vector<8x8xf32>
    %cst_19 = arith.constant dense<0.000000e+00> : vector<8xf32>
    %124 = vector.multi_reduction <add>, %123, %cst_19 [0] : vector<8x8xf32> to vector<8xf32>
    %125 = vector.shape_cast %124 : vector<8xf32> to vector<1x8xf32>
    %126 = vector.extract_strided_slice %101 {offsets = [1, 0], sizes = [1, 8], strides = [1, 1]} : vector<16x8xf32> to vector<1x8xf32>
    %127 = arith.addf %125, %126 : vector<1x8xf32>
    %128 = vector.broadcast %127 : vector<1x8xf32> to vector<8x8xf32>
    %129 = arith.mulf %128, %31 : vector<8x8xf32>
    %cst_20 = arith.constant dense<0.000000e+00> : vector<8xf32>
    %130 = vector.multi_reduction <add>, %129, %cst_20 [1] : vector<8x8xf32> to vector<8xf32>
    %131 = vector.shape_cast %130 : vector<8xf32> to vector<8x1xf32>
    %132 = vector.extract_strided_slice %78 {offsets = [0, 2], sizes = [8, 1], strides = [1, 1]} : vector<8x16xf32> to vector<8x1xf32>
    %133 = arith.addf %131, %132 : vector<8x1xf32>
    %134 = vector.broadcast %121 : vector<8x1xf32> to vector<8x8xf32>
    %135 = arith.mulf %134, %55 : vector<8x8xf32>
    %cst_21 = arith.constant dense<0.000000e+00> : vector<8xf32>
    %136 = vector.multi_reduction <add>, %135, %cst_21 [0] : vector<8x8xf32> to vector<8xf32>
    %137 = vector.shape_cast %136 : vector<8xf32> to vector<1x8xf32>
    %138 = vector.extract_strided_slice %101 {offsets = [2, 0], sizes = [1, 8], strides = [1, 1]} : vector<16x8xf32> to vector<1x8xf32>
    %139 = arith.addf %137, %138 : vector<1x8xf32>
    %140 = vector.broadcast %139 : vector<1x8xf32> to vector<8x8xf32>
    %141 = arith.mulf %140, %31 : vector<8x8xf32>
    %cst_22 = arith.constant dense<0.000000e+00> : vector<8xf32>
    %142 = vector.multi_reduction <add>, %141, %cst_22 [1] : vector<8x8xf32> to vector<8xf32>
    %143 = vector.shape_cast %142 : vector<8xf32> to vector<8x1xf32>
    %144 = vector.extract_strided_slice %78 {offsets = [0, 3], sizes = [8, 1], strides = [1, 1]} : vector<8x16xf32> to vector<8x1xf32>
    %145 = arith.addf %143, %144 : vector<8x1xf32>
    %146 = vector.broadcast %133 : vector<8x1xf32> to vector<8x8xf32>
    %147 = arith.mulf %146, %55 : vector<8x8xf32>
    %cst_23 = arith.constant dense<0.000000e+00> : vector<8xf32>
    %148 = vector.multi_reduction <add>, %147, %cst_23 [0] : vector<8x8xf32> to vector<8xf32>
    %149 = vector.shape_cast %148 : vector<8xf32> to vector<1x8xf32>
    %150 = vector.extract_strided_slice %101 {offsets = [3, 0], sizes = [1, 8], strides = [1, 1]} : vector<16x8xf32> to vector<1x8xf32>
    %151 = arith.addf %149, %150 : vector<1x8xf32>
    %152 = vector.broadcast %151 : vector<1x8xf32> to vector<8x8xf32>
    %153 = arith.mulf %152, %31 : vector<8x8xf32>
    %cst_24 = arith.constant dense<0.000000e+00> : vector<8xf32>
    %154 = vector.multi_reduction <add>, %153, %cst_24 [1] : vector<8x8xf32> to vector<8xf32>
    %155 = vector.shape_cast %154 : vector<8xf32> to vector<8x1xf32>
    %156 = vector.extract_strided_slice %78 {offsets = [0, 4], sizes = [8, 1], strides = [1, 1]} : vector<8x16xf32> to vector<8x1xf32>
    %157 = arith.addf %155, %156 : vector<8x1xf32>
    %158 = vector.broadcast %145 : vector<8x1xf32> to vector<8x8xf32>
    %159 = arith.mulf %158, %55 : vector<8x8xf32>
    %cst_25 = arith.constant dense<0.000000e+00> : vector<8xf32>
    %160 = vector.multi_reduction <add>, %159, %cst_25 [0] : vector<8x8xf32> to vector<8xf32>
    %161 = vector.shape_cast %160 : vector<8xf32> to vector<1x8xf32>
    %162 = vector.extract_strided_slice %101 {offsets = [4, 0], sizes = [1, 8], strides = [1, 1]} : vector<16x8xf32> to vector<1x8xf32>
    %163 = arith.addf %161, %162 : vector<1x8xf32>
    %164 = vector.broadcast %163 : vector<1x8xf32> to vector<8x8xf32>
    %165 = arith.mulf %164, %31 : vector<8x8xf32>
    %cst_26 = arith.constant dense<0.000000e+00> : vector<8xf32>
    %166 = vector.multi_reduction <add>, %165, %cst_26 [1] : vector<8x8xf32> to vector<8xf32>
    %167 = vector.shape_cast %166 : vector<8xf32> to vector<8x1xf32>
    %168 = vector.extract_strided_slice %78 {offsets = [0, 5], sizes = [8, 1], strides = [1, 1]} : vector<8x16xf32> to vector<8x1xf32>
    %169 = arith.addf %167, %168 : vector<8x1xf32>
    %170 = vector.broadcast %157 : vector<8x1xf32> to vector<8x8xf32>
    %171 = arith.mulf %170, %55 : vector<8x8xf32>
    %cst_27 = arith.constant dense<0.000000e+00> : vector<8xf32>
    %172 = vector.multi_reduction <add>, %171, %cst_27 [0] : vector<8x8xf32> to vector<8xf32>
    %173 = vector.shape_cast %172 : vector<8xf32> to vector<1x8xf32>
    %174 = vector.extract_strided_slice %101 {offsets = [5, 0], sizes = [1, 8], strides = [1, 1]} : vector<16x8xf32> to vector<1x8xf32>
    %175 = arith.addf %173, %174 : vector<1x8xf32>
    %176 = vector.broadcast %175 : vector<1x8xf32> to vector<8x8xf32>
    %177 = arith.mulf %176, %31 : vector<8x8xf32>
    %cst_28 = arith.constant dense<0.000000e+00> : vector<8xf32>
    %178 = vector.multi_reduction <add>, %177, %cst_28 [1] : vector<8x8xf32> to vector<8xf32>
    %179 = vector.shape_cast %178 : vector<8xf32> to vector<8x1xf32>
    %180 = vector.extract_strided_slice %78 {offsets = [0, 6], sizes = [8, 1], strides = [1, 1]} : vector<8x16xf32> to vector<8x1xf32>
    %181 = arith.addf %179, %180 : vector<8x1xf32>
    %182 = vector.broadcast %169 : vector<8x1xf32> to vector<8x8xf32>
    %183 = arith.mulf %182, %55 : vector<8x8xf32>
    %cst_29 = arith.constant dense<0.000000e+00> : vector<8xf32>
    %184 = vector.multi_reduction <add>, %183, %cst_29 [0] : vector<8x8xf32> to vector<8xf32>
    %185 = vector.shape_cast %184 : vector<8xf32> to vector<1x8xf32>
    %186 = vector.extract_strided_slice %101 {offsets = [6, 0], sizes = [1, 8], strides = [1, 1]} : vector<16x8xf32> to vector<1x8xf32>
    %187 = arith.addf %185, %186 : vector<1x8xf32>
    %188 = vector.broadcast %187 : vector<1x8xf32> to vector<8x8xf32>
    %189 = arith.mulf %188, %31 : vector<8x8xf32>
    %cst_30 = arith.constant dense<0.000000e+00> : vector<8xf32>
    %190 = vector.multi_reduction <add>, %189, %cst_30 [1] : vector<8x8xf32> to vector<8xf32>
    %191 = vector.shape_cast %190 : vector<8xf32> to vector<8x1xf32>
    %192 = vector.extract_strided_slice %78 {offsets = [0, 7], sizes = [8, 1], strides = [1, 1]} : vector<8x16xf32> to vector<8x1xf32>
    %193 = arith.addf %191, %192 : vector<8x1xf32>
    %194 = vector.broadcast %181 : vector<8x1xf32> to vector<8x8xf32>
    %195 = arith.mulf %194, %55 : vector<8x8xf32>
    %cst_31 = arith.constant dense<0.000000e+00> : vector<8xf32>
    %196 = vector.multi_reduction <add>, %195, %cst_31 [0] : vector<8x8xf32> to vector<8xf32>
    %197 = vector.shape_cast %196 : vector<8xf32> to vector<1x8xf32>
    %198 = vector.extract_strided_slice %101 {offsets = [7, 0], sizes = [1, 8], strides = [1, 1]} : vector<16x8xf32> to vector<1x8xf32>
    %199 = arith.addf %197, %198 : vector<1x8xf32>
    %200 = vector.broadcast %199 : vector<1x8xf32> to vector<8x8xf32>
    %201 = arith.mulf %200, %31 : vector<8x8xf32>
    %cst_32 = arith.constant dense<0.000000e+00> : vector<8xf32>
    %202 = vector.multi_reduction <add>, %201, %cst_32 [1] : vector<8x8xf32> to vector<8xf32>
    %203 = vector.shape_cast %202 : vector<8xf32> to vector<8x1xf32>
    %204 = vector.extract_strided_slice %78 {offsets = [0, 8], sizes = [8, 1], strides = [1, 1]} : vector<8x16xf32> to vector<8x1xf32>
    %205 = arith.addf %203, %204 : vector<8x1xf32>
    %206 = vector.broadcast %193 : vector<8x1xf32> to vector<8x8xf32>
    %207 = arith.mulf %206, %55 : vector<8x8xf32>
    %cst_33 = arith.constant dense<0.000000e+00> : vector<8xf32>
    %208 = vector.multi_reduction <add>, %207, %cst_33 [0] : vector<8x8xf32> to vector<8xf32>
    %209 = vector.shape_cast %208 : vector<8xf32> to vector<1x8xf32>
    %210 = vector.extract_strided_slice %101 {offsets = [8, 0], sizes = [1, 8], strides = [1, 1]} : vector<16x8xf32> to vector<1x8xf32>
    %211 = arith.addf %209, %210 : vector<1x8xf32>
    %212 = vector.broadcast %211 : vector<1x8xf32> to vector<8x8xf32>
    %213 = arith.mulf %212, %31 : vector<8x8xf32>
    %cst_34 = arith.constant dense<0.000000e+00> : vector<8xf32>
    %214 = vector.multi_reduction <add>, %213, %cst_34 [1] : vector<8x8xf32> to vector<8xf32>
    %215 = vector.shape_cast %214 : vector<8xf32> to vector<8x1xf32>
    %216 = vector.extract_strided_slice %78 {offsets = [0, 9], sizes = [8, 1], strides = [1, 1]} : vector<8x16xf32> to vector<8x1xf32>
    %217 = arith.addf %215, %216 : vector<8x1xf32>
    %218 = vector.broadcast %205 : vector<8x1xf32> to vector<8x8xf32>
    %219 = arith.mulf %218, %55 : vector<8x8xf32>
    %cst_35 = arith.constant dense<0.000000e+00> : vector<8xf32>
    %220 = vector.multi_reduction <add>, %219, %cst_35 [0] : vector<8x8xf32> to vector<8xf32>
    %221 = vector.shape_cast %220 : vector<8xf32> to vector<1x8xf32>
    %222 = vector.extract_strided_slice %101 {offsets = [9, 0], sizes = [1, 8], strides = [1, 1]} : vector<16x8xf32> to vector<1x8xf32>
    %223 = arith.addf %221, %222 : vector<1x8xf32>
    %224 = vector.broadcast %223 : vector<1x8xf32> to vector<8x8xf32>
    %225 = arith.mulf %224, %31 : vector<8x8xf32>
    %cst_36 = arith.constant dense<0.000000e+00> : vector<8xf32>
    %226 = vector.multi_reduction <add>, %225, %cst_36 [1] : vector<8x8xf32> to vector<8xf32>
    %227 = vector.shape_cast %226 : vector<8xf32> to vector<8x1xf32>
    %228 = vector.extract_strided_slice %78 {offsets = [0, 10], sizes = [8, 1], strides = [1, 1]} : vector<8x16xf32> to vector<8x1xf32>
    %229 = arith.addf %227, %228 : vector<8x1xf32>
    %230 = vector.broadcast %217 : vector<8x1xf32> to vector<8x8xf32>
    %231 = arith.mulf %230, %55 : vector<8x8xf32>
    %cst_37 = arith.constant dense<0.000000e+00> : vector<8xf32>
    %232 = vector.multi_reduction <add>, %231, %cst_37 [0] : vector<8x8xf32> to vector<8xf32>
    %233 = vector.shape_cast %232 : vector<8xf32> to vector<1x8xf32>
    %234 = vector.extract_strided_slice %101 {offsets = [10, 0], sizes = [1, 8], strides = [1, 1]} : vector<16x8xf32> to vector<1x8xf32>
    %235 = arith.addf %233, %234 : vector<1x8xf32>
    %236 = vector.broadcast %235 : vector<1x8xf32> to vector<8x8xf32>
    %237 = arith.mulf %236, %31 : vector<8x8xf32>
    %cst_38 = arith.constant dense<0.000000e+00> : vector<8xf32>
    %238 = vector.multi_reduction <add>, %237, %cst_38 [1] : vector<8x8xf32> to vector<8xf32>
    %239 = vector.shape_cast %238 : vector<8xf32> to vector<8x1xf32>
    %240 = vector.extract_strided_slice %78 {offsets = [0, 11], sizes = [8, 1], strides = [1, 1]} : vector<8x16xf32> to vector<8x1xf32>
    %241 = arith.addf %239, %240 : vector<8x1xf32>
    %242 = vector.broadcast %229 : vector<8x1xf32> to vector<8x8xf32>
    %243 = arith.mulf %242, %55 : vector<8x8xf32>
    %cst_39 = arith.constant dense<0.000000e+00> : vector<8xf32>
    %244 = vector.multi_reduction <add>, %243, %cst_39 [0] : vector<8x8xf32> to vector<8xf32>
    %245 = vector.shape_cast %244 : vector<8xf32> to vector<1x8xf32>
    %246 = vector.extract_strided_slice %101 {offsets = [11, 0], sizes = [1, 8], strides = [1, 1]} : vector<16x8xf32> to vector<1x8xf32>
    %247 = arith.addf %245, %246 : vector<1x8xf32>
    %248 = vector.broadcast %247 : vector<1x8xf32> to vector<8x8xf32>
    %249 = arith.mulf %248, %31 : vector<8x8xf32>
    %cst_40 = arith.constant dense<0.000000e+00> : vector<8xf32>
    %250 = vector.multi_reduction <add>, %249, %cst_40 [1] : vector<8x8xf32> to vector<8xf32>
    %251 = vector.shape_cast %250 : vector<8xf32> to vector<8x1xf32>
    %252 = vector.extract_strided_slice %78 {offsets = [0, 12], sizes = [8, 1], strides = [1, 1]} : vector<8x16xf32> to vector<8x1xf32>
    %253 = arith.addf %251, %252 : vector<8x1xf32>
    %254 = vector.broadcast %241 : vector<8x1xf32> to vector<8x8xf32>
    %255 = arith.mulf %254, %55 : vector<8x8xf32>
    %cst_41 = arith.constant dense<0.000000e+00> : vector<8xf32>
    %256 = vector.multi_reduction <add>, %255, %cst_41 [0] : vector<8x8xf32> to vector<8xf32>
    %257 = vector.shape_cast %256 : vector<8xf32> to vector<1x8xf32>
    %258 = vector.extract_strided_slice %101 {offsets = [12, 0], sizes = [1, 8], strides = [1, 1]} : vector<16x8xf32> to vector<1x8xf32>
    %259 = arith.addf %257, %258 : vector<1x8xf32>
    %260 = vector.broadcast %259 : vector<1x8xf32> to vector<8x8xf32>
    %261 = arith.mulf %260, %31 : vector<8x8xf32>
    %cst_42 = arith.constant dense<0.000000e+00> : vector<8xf32>
    %262 = vector.multi_reduction <add>, %261, %cst_42 [1] : vector<8x8xf32> to vector<8xf32>
    %263 = vector.shape_cast %262 : vector<8xf32> to vector<8x1xf32>
    %264 = vector.extract_strided_slice %78 {offsets = [0, 13], sizes = [8, 1], strides = [1, 1]} : vector<8x16xf32> to vector<8x1xf32>
    %265 = arith.addf %263, %264 : vector<8x1xf32>
    %266 = vector.broadcast %253 : vector<8x1xf32> to vector<8x8xf32>
    %267 = arith.mulf %266, %55 : vector<8x8xf32>
    %cst_43 = arith.constant dense<0.000000e+00> : vector<8xf32>
    %268 = vector.multi_reduction <add>, %267, %cst_43 [0] : vector<8x8xf32> to vector<8xf32>
    %269 = vector.shape_cast %268 : vector<8xf32> to vector<1x8xf32>
    %270 = vector.extract_strided_slice %101 {offsets = [13, 0], sizes = [1, 8], strides = [1, 1]} : vector<16x8xf32> to vector<1x8xf32>
    %271 = arith.addf %269, %270 : vector<1x8xf32>
    %272 = vector.broadcast %265 : vector<8x1xf32> to vector<8x8xf32>
    %273 = arith.mulf %272, %55 : vector<8x8xf32>
    %cst_44 = arith.constant dense<0.000000e+00> : vector<8xf32>
    %274 = vector.multi_reduction <add>, %273, %cst_44 [0] : vector<8x8xf32> to vector<8xf32>
    %275 = vector.shape_cast %274 : vector<8xf32> to vector<1x8xf32>
    %276 = vector.extract_strided_slice %101 {offsets = [14, 0], sizes = [1, 8], strides = [1, 1]} : vector<16x8xf32> to vector<1x8xf32>
    %277 = arith.addf %275, %276 : vector<1x8xf32>
    %278 = tpu.concatenate %102, %115, %127, %139, %151, %163, %175, %187, %199, %211, %223, %235, %247, %259, %271, %277 in 0 : vector<1x8xf32>, vector<1x8xf32>, vector<1x8xf32>, vector<1x8xf32>, vector<1x8xf32>, vector<1x8xf32>, vector<1x8xf32>, vector<1x8xf32>, vector<1x8xf32>, vector<1x8xf32>, vector<1x8xf32>, vector<1x8xf32>, vector<1x8xf32>, vector<1x8xf32>, vector<1x8xf32>, vector<1x8xf32> -> vector<16x8xf32>
    %cst_45 = arith.constant dense<0.000000e+00> : vector<16x4xf32>
    %279 = tpu.matmul %278, %3, %cst_45 {dimension_numbers = #tpu.dot_dimension_numbers<[1], [0], [0], [1], [0, 0, 1, 1], [], []>} : vector<16x8xf32>, vector<8x4xf32>, vector<16x4xf32> -> vector<16x4xf32>
    %c0_46 = arith.constant 0 : index
    %c0_47 = arith.constant 0 : index
    %280 = vector.load %arg8[%c0_46, %c0_47] : memref<16x4xf32, #tpu.memory_space<vmem>>, vector<16x4xf32>
    tpu.vector_store %arg8[%c0_46, %c0_47], %279 {strides = array<i32>} : memref<16x4xf32, #tpu.memory_space<vmem>>, vector<16x4xf32>,
    return
  }
}

</mosaic_0001>

<llo_original>
// kernel: dspo_forward.1
$region0: #{dspo_forward.1}
  #allocation0 [shape = 'u32[]', space=smem, size = 0x4, offset = 0x4, fixed_abs, tag = 'smem constant byte address 0x4 - core index']
  #allocation1 [shape = 'u32[144,128]{1,0:T(1,128)}', space=vmem, size = 0x12000, scoped, tag = 'internal scratch']
  %s0 = inlined_call_operand.vmem [shape: f32[4,16], index: 0, kind: input, shape index: {}]
  %s1 = inlined_call_operand.vmem [shape: f32[16,4], index: 1, kind: input, shape index: {}]
  %s2 = inlined_call_operand.vmem [shape: f32[8,8], index: 2, kind: input, shape index: {}]
  %s3 = inlined_call_operand.vmem [shape: f32[8,8], index: 3, kind: input, shape index: {}]
  %s4 = inlined_call_operand.vmem [shape: f32[4,8], index: 4, kind: input, shape index: {}]
  %s5 = inlined_call_operand.vmem [shape: f32[8,4], index: 5, kind: input, shape index: {}]
  %s6 = inlined_call_operand.vmem [shape: f32[8,4], index: 6, kind: input, shape index: {}]
  %s7 = inlined_call_operand.vmem [shape: f32[4,8], index: 7, kind: input, shape index: {}]
  %s8 = inlined_call_operand.vmem [shape: f32[16,4], index: 8, kind: output, shape index: {}]
  %s9 = sld [smem:[#allocation0]]
  $region42: #{dspo_forward.1} parent=0
    _
  %s11 = ssub.s32 1, %s9
  %s12 = scalar_select 0, %s11, %s9
  // Predicated region
  $region2: #{dspo_forward.1} parent=0 // pred_check
    _
  $region3: #{dspo_forward.1} parent=0 // pred_check_branch
    %14 = sbr.rel (0) target = $region5
  $region4: #{dspo_forward.1} parent=0 // pred_region
    _
  $region5: #{dspo_forward.1} parent=0 // pred_fallthru
    _
  // Predicated region
  $region6: #{dspo_forward.1} parent=0 // pred_check
    _
  $region7: #{dspo_forward.1} parent=0 // pred_check_branch
    %16 = sbr.rel (0) target = $region9
  $region8: #{dspo_forward.1} parent=0 // pred_region
    _
  $region9: #{dspo_forward.1} parent=0 // pred_fallthru
    _
  // Predicated region
  $region10: #{dspo_forward.1} parent=0 // pred_check
    _
  $region11: #{dspo_forward.1} parent=0 // pred_check_branch
    %18 = sbr.rel (0) target = $region13
  $region12: #{dspo_forward.1} parent=0 // pred_region
    _
  $region13: #{dspo_forward.1} parent=0 // pred_fallthru
    _
  // Predicated region
  $region14: #{dspo_forward.1} parent=0 // pred_check
    _
  $region15: #{dspo_forward.1} parent=0 // pred_check_branch
    %20 = sbr.rel (0) target = $region17
  $region16: #{dspo_forward.1} parent=0 // pred_region
    _
  $region17: #{dspo_forward.1} parent=0 // pred_fallthru
    _
  // Predicated region
  $region18: #{dspo_forward.1} parent=0 // pred_check
    _
  $region19: #{dspo_forward.1} parent=0 // pred_check_branch
    %22 = sbr.rel (0) target = $region21
  $region20: #{dspo_forward.1} parent=0 // pred_region
    _
  $region21: #{dspo_forward.1} parent=0 // pred_fallthru
    _
  // Predicated region
  $region22: #{dspo_forward.1} parent=0 // pred_check
    _
  $region23: #{dspo_forward.1} parent=0 // pred_check_branch
    %24 = sbr.rel (0) target = $region25
  $region24: #{dspo_forward.1} parent=0 // pred_region
    _
  $region25: #{dspo_forward.1} parent=0 // pred_fallthru
    _
  // Predicated region
  $region26: #{dspo_forward.1} parent=0 // pred_check
    _
  $region27: #{dspo_forward.1} parent=0 // pred_check_branch
    %26 = sbr.rel (0) target = $region29
  $region28: #{dspo_forward.1} parent=0 // pred_region
    _
  $region29: #{dspo_forward.1} parent=0 // pred_fallthru
    _
  // Predicated region
  $region30: #{dspo_forward.1} parent=0 // pred_check
    _
  $region31: #{dspo_forward.1} parent=0 // pred_check_branch
    %28 = sbr.rel (0) target = $region33
  $region32: #{dspo_forward.1} parent=0 // pred_region
    _
  $region33: #{dspo_forward.1} parent=0 // pred_fallthru
    _
  %v29 = vld [vmem:[%s2] sm:$0xff]
  %v30 = vld [vmem:[%s3] sm:$0xff]
  %v31 = vld [vmem:[%s4] sm:$0xf]
  %v32 = vld [vmem:[%s5] sm:$0xff]
  %v33 = vld [vmem:[%s6] sm:$0xff]
  %v34 = vld [vmem:[%s7] sm:$0xf]
  %v35 = vld [vmem:[%s0] sm:$0xf]
  %v36 = vld [vmem:[%s1] sm:$0xff]
  %v37 = vld [vmem:[%s1 + $0x8] sm:$0xff]
  %39 = vset.pattern.permute.xlu0 0
  %40 = vperm.xlu0 %39, %v33
  %v41 = vpop.permute.xlu0 %40
  %v43 = vlaneseq
  %v44 = vshrl.u32 %v43, 7
  %v45 = vsub.s32 0, %v44
  %v46 = vrot.slane %v31, %v45
  %v47 = vmul.f32 %v41, %v46
  %48 = vset.pattern.permute.xlu0 1
  %49 = vperm.xlu0 %48, %v33
  %v50 = vpop.permute.xlu0 %49
  %v52 = vlaneseq
  %v53 = vshrl.u32 %v52, 7
  %v54 = vsub.s32 1, %v53
  %v55 = vrot.slane %v31, %v54
  %v56 = vmul.f32 %v50, %v55
  %v57 = vadd.f32 %v47, %v56
  %58 = vset.pattern.permute.xlu0 2
  %59 = vperm.xlu0 %58, %v33
  %v60 = vpop.permute.xlu0 %59
  %v62 = vlaneseq
  %v63 = vshrl.u32 %v62, 7
  %v64 = vsub.s32 2, %v63
  %v65 = vrot.slane %v31, %v64
  %v66 = vmul.f32 %v60, %v65
  %v67 = vadd.f32 %v57, %v66
  %68 = vset.pattern.permute.xlu0 3
  %69 = vperm.xlu0 %68, %v33
  %v70 = vpop.permute.xlu0 %69
  %v72 = vlaneseq
  %v73 = vshrl.u32 %v72, 7
  %v74 = vsub.s32 3, %v73
  %v75 = vrot.slane %v31, %v74
  %v76 = vmul.f32 %v70, %v75
  %v77 = vadd.f32 %v67, %v76
  %v78 = vsub.f32 %v29, %v77
  %80 = vset.pattern.permute.xlu0 0
  %81 = vperm.xlu0 %80, %v32
  %v82 = vpop.permute.xlu0 %81
  %v84 = vlaneseq
  %v85 = vshrl.u32 %v84, 7
  %v86 = vsub.s32 0, %v85
  %v87 = vrot.slane %v34, %v86
  %v88 = vmul.f32 %v82, %v87
  %89 = vset.pattern.permute.xlu0 1
  %90 = vperm.xlu0 %89, %v32
  %v91 = vpop.permute.xlu0 %90
  %v93 = vlaneseq
  %v94 = vshrl.u32 %v93, 7
  %v95 = vsub.s32 1, %v94
  %v96 = vrot.slane %v34, %v95
  %v97 = vmul.f32 %v91, %v96
  %v98 = vadd.f32 %v88, %v97
  %99 = vset.pattern.permute.xlu0 2
  %100 = vperm.xlu0 %99, %v32
  %v101 = vpop.permute.xlu0 %100
  %v103 = vlaneseq
  %v104 = vshrl.u32 %v103, 7
  %v105 = vsub.s32 2, %v104
  %v106 = vrot.slane %v34, %v105
  %v107 = vmul.f32 %v101, %v106
  %v108 = vadd.f32 %v98, %v107
  %109 = vset.pattern.permute.xlu0 3
  %110 = vperm.xlu0 %109, %v32
  %v111 = vpop.permute.xlu0 %110
  %v113 = vlaneseq
  %v114 = vshrl.u32 %v113, 7
  %v115 = vsub.s32 3, %v114
  %v116 = vrot.slane %v34, %v115
  %v117 = vmul.f32 %v111, %v116
  %v118 = vadd.f32 %v108, %v117
  %v119 = vsub.f32 %v30, %v118
  %v120 = vlaneseq
  %v121 = vshrl.u32 %v120, 7
  %v122 = vsub.s32 0, %v121
  %v123 = vrot.slane %v35, %v122
  %v124 = vmul.f32 %v41, %v123
  %v125 = vlaneseq
  %v126 = vshrl.u32 %v125, 7
  %v127 = vsub.s32 1, %v126
  %v128 = vrot.slane %v35, %v127
  %v129 = vmul.f32 %v50, %v128
  %v130 = vadd.f32 %v124, %v129
  %v131 = vlaneseq
  %v132 = vshrl.u32 %v131, 7
  %v133 = vsub.s32 2, %v132
  %v134 = vrot.slane %v35, %v133
  %v135 = vmul.f32 %v60, %v134
  %v136 = vadd.f32 %v130, %v135
  %v137 = vlaneseq
  %v138 = vshrl.u32 %v137, 7
  %v139 = vsub.s32 3, %v138
  %v140 = vrot.slane %v35, %v139
  %v141 = vmul.f32 %v70, %v140
  %v142 = vadd.f32 %v136, %v141
  %144 = vset.pattern.permute.xlu0 0
  %145 = vperm.xlu0 %144, %v36
  %v146 = vpop.permute.xlu0 %145
  %149 = vset.pattern.permute.xlu0 0
  %150 = vperm.xlu0 %149, %v37
  %v151 = vpop.permute.xlu0 %150
  %v153 = vmul.f32 %v146, %v87
  %v154 = vmul.f32 %v151, %v87
  %155 = vset.pattern.permute.xlu0 1
  %156 = vperm.xlu0 %155, %v36
  %v157 = vpop.permute.xlu0 %156
  %159 = vset.pattern.permute.xlu0 1
  %160 = vperm.xlu0 %159, %v37
  %v161 = vpop.permute.xlu0 %160
  %v163 = vmul.f32 %v157, %v96
  %v164 = vmul.f32 %v161, %v96
  %v165 = vadd.f32 %v153, %v163
  %v166 = vadd.f32 %v154, %v164
  %167 = vset.pattern.permute.xlu0 2
  %168 = vperm.xlu0 %167, %v36
  %v169 = vpop.permute.xlu0 %168
  %171 = vset.pattern.permute.xlu0 2
  %172 = vperm.xlu0 %171, %v37
  %v173 = vpop.permute.xlu0 %172
  %v175 = vmul.f32 %v169, %v106
  %v176 = vmul.f32 %v173, %v106
  %v177 = vadd.f32 %v165, %v175
  %v178 = vadd.f32 %v166, %v176
  %179 = vset.pattern.permute.xlu0 3
  %180 = vperm.xlu0 %179, %v36
  %v181 = vpop.permute.xlu0 %180
  %183 = vset.pattern.permute.xlu0 3
  %184 = vperm.xlu0 %183, %v37
  %v185 = vpop.permute.xlu0 %184
  %v187 = vmul.f32 %v181, %v116
  %v188 = vmul.f32 %v185, %v116
  %v189 = vadd.f32 %v177, %v187
  %v190 = vadd.f32 %v178, %v188
  %v191 = vmul.f32 %v78, 0.0
  %vm192 = vcmask 64512
  %v193 = vsel %vm192, %v191, 0.0
  %194 = vadd.xlane.f32.xlu0 %v193
  %v195 = vpop.xlane.xlu0 %194
  %v196 = vadd.f32 %v195, %v142
  %v197 = vmul.f32 %v119, 0.0
  %v198 = vsel %vm192, %v197, 0.0
  %v199 = vrot.slane %v198, 4
  %v200 = vadd.f32 %v198, %v199
  %v201 = vrot.slane %v200, 2
  %v202 = vadd.f32 %v200, %v201
  %v203 = vrot.slane %v202, 1
  %v204 = vadd.f32 %v202, %v203
  %v205 = vadd.f32 %v204, %v189
  %v206 = vlaneseq
  %v207 = vshrl.u32 %v206, 7
  %v208 = vsub.s32 0, %v207
  %v209 = vrot.slane %v205, %v208
  %v210 = vmul.f32 %v209, %v78
  %v211 = vsel %vm192, %v210, 0.0
  %212 = vadd.xlane.f32.xlu0 %v211
  %v213 = vpop.xlane.xlu0 %212
  %v214 = vadd.f32 %v213, %v142
  %216 = vset.pattern.permute.xlu0 0
  %217 = vperm.xlu0 %216, %v196
  %v218 = vpop.permute.xlu0 %217
  %v220 = vmul.f32 %v218, %v119
  %v221 = vsel %vm192, %v220, 0.0
  %v222 = vrot.slane %v221, 4
  %v223 = vadd.f32 %v221, %v222
  %v224 = vrot.slane %v223, 2
  %v225 = vadd.f32 %v223, %v224
  %v226 = vrot.slane %v225, 1
  %v227 = vadd.f32 %v225, %v226
  %v228 = vadd.f32 %v227, %v189
  %v229 = vlaneseq
  %v230 = vshrl.u32 %v229, 7
  %v231 = vsub.s32 1, %v230
  %v232 = vrot.slane %v228, %v231
  %v233 = vmul.f32 %v232, %v78
  %v234 = vsel %vm192, %v233, 0.0
  %235 = vadd.xlane.f32.xlu0 %v234
  %v236 = vpop.xlane.xlu0 %235
  %v237 = vadd.f32 %v236, %v142
  %239 = vset.pattern.permute.xlu0 1
  %240 = vperm.xlu0 %239, %v214
  %v241 = vpop.permute.xlu0 %240
  %v243 = vmul.f32 %v241, %v119
  %v244 = vsel %vm192, %v243, 0.0
  %v245 = vrot.slane %v244, 4
  %v246 = vadd.f32 %v244, %v245
  %v247 = vrot.slane %v246, 2
  %v248 = vadd.f32 %v246, %v247
  %v249 = vrot.slane %v248, 1
  %v250 = vadd.f32 %v248, %v249
  %v251 = vadd.f32 %v250, %v189
  %v252 = vlaneseq
  %v253 = vshrl.u32 %v252, 7
  %v254 = vsub.s32 2, %v253
  %v255 = vrot.slane %v251, %v254
  %v256 = vmul.f32 %v255, %v78
  %v257 = vsel %vm192, %v256, 0.0
  %258 = vadd.xlane.f32.xlu0 %v257
  %v259 = vpop.xlane.xlu0 %258
  %v260 = vadd.f32 %v259, %v142
  %262 = vset.pattern.permute.xlu0 2
  %263 = vperm.xlu0 %262, %v237
  %v264 = vpop.permute.xlu0 %263
  %v266 = vmul.f32 %v264, %v119
  %v267 = vsel %vm192, %v266, 0.0
  %v268 = vrot.slane %v267, 4
  %v269 = vadd.f32 %v267, %v268
  %v270 = vrot.slane %v269, 2
  %v271 = vadd.f32 %v269, %v270
  %v272 = vrot.slane %v271, 1
  %v273 = vadd.f32 %v271, %v272
  %v274 = vadd.f32 %v273, %v189
  %v275 = vlaneseq
  %v276 = vshrl.u32 %v275, 7
  %v277 = vsub.s32 3, %v276
  %v278 = vrot.slane %v274, %v277
  %v279 = vmul.f32 %v278, %v78
  %v280 = vsel %vm192, %v279, 0.0
  %281 = vadd.xlane.f32.xlu0 %v280
  %v282 = vpop.xlane.xlu0 %281
  %v283 = vadd.f32 %v282, %v142
  %285 = vset.pattern.permute.xlu0 3
  %286 = vperm.xlu0 %285, %v260
  %v287 = vpop.permute.xlu0 %286
  %v289 = vmul.f32 %v287, %v119
  %v290 = vsel %vm192, %v289, 0.0
  %v291 = vrot.slane %v290, 4
  %v292 = vadd.f32 %v290, %v291
  %v293 = vrot.slane %v292, 2
  %v294 = vadd.f32 %v292, %v293
  %v295 = vrot.slane %v294, 1
  %v296 = vadd.f32 %v294, %v295
  %v297 = vadd.f32 %v296, %v189
  %v298 = vlaneseq
  %v299 = vshrl.u32 %v298, 7
  %v300 = vsub.s32 4, %v299
  %v301 = vrot.slane %v297, %v300
  %v302 = vmul.f32 %v301, %v78
  %v303 = vsel %vm192, %v302, 0.0
  %304 = vadd.xlane.f32.xlu0 %v303
  %v305 = vpop.xlane.xlu0 %304
  %v306 = vadd.f32 %v305, %v142
  %308 = vset.pattern.permute.xlu0 4
  %309 = vperm.xlu0 %308, %v283
  %v310 = vpop.permute.xlu0 %309
  %v312 = vmul.f32 %v310, %v119
  %v313 = vsel %vm192, %v312, 0.0
  %v314 = vrot.slane %v313, 4
  %v315 = vadd.f32 %v313, %v314
  %v316 = vrot.slane %v315, 2
  %v317 = vadd.f32 %v315, %v316
  %v318 = vrot.slane %v317, 1
  %v319 = vadd.f32 %v317, %v318
  %v320 = vadd.f32 %v319, %v189
  %v321 = vlaneseq
  %v322 = vshrl.u32 %v321, 7
  %v323 = vsub.s32 5, %v322
  %v324 = vrot.slane %v320, %v323
  %v325 = vmul.f32 %v324, %v78
  %v326 = vsel %vm192, %v325, 0.0
  %327 = vadd.xlane.f32.xlu0 %v326
  %v328 = vpop.xlane.xlu0 %327
  %v329 = vadd.f32 %v328, %v142
  %331 = vset.pattern.permute.xlu0 5
  %332 = vperm.xlu0 %331, %v306
  %v333 = vpop.permute.xlu0 %332
  %v335 = vmul.f32 %v333, %v119
  %v336 = vsel %vm192, %v335, 0.0
  %v337 = vrot.slane %v336, 4
  %v338 = vadd.f32 %v336, %v337
  %v339 = vrot.slane %v338, 2
  %v340 = vadd.f32 %v338, %v339
  %v341 = vrot.slane %v340, 1
  %v342 = vadd.f32 %v340, %v341
  %v343 = vadd.f32 %v342, %v189
  %v344 = vlaneseq
  %v345 = vshrl.u32 %v344, 7
  %v346 = vsub.s32 6, %v345
  %v347 = vrot.slane %v343, %v346
  %v348 = vmul.f32 %v347, %v78
  %v349 = vsel %vm192, %v348, 0.0
  %350 = vadd.xlane.f32.xlu0 %v349
  %v351 = vpop.xlane.xlu0 %350
  %v352 = vadd.f32 %v351, %v142
  %354 = vset.pattern.permute.xlu0 6
  %355 = vperm.xlu0 %354, %v329
  %v356 = vpop.permute.xlu0 %355
  %v358 = vmul.f32 %v356, %v119
  %v359 = vsel %vm192, %v358, 0.0
  %v360 = vrot.slane %v359, 4
  %v361 = vadd.f32 %v359, %v360
  %v362 = vrot.slane %v361, 2
  %v363 = vadd.f32 %v361, %v362
  %v364 = vrot.slane %v363, 1
  %v365 = vadd.f32 %v363, %v364
  %v366 = vadd.f32 %v365, %v189
  %v367 = vlaneseq
  %v368 = vshrl.u32 %v367, 7
  %v369 = vsub.s32 7, %v368
  %v370 = vrot.slane %v366, %v369
  %v371 = vmul.f32 %v370, %v78
  %v372 = vsel %vm192, %v371, 0.0
  %373 = vadd.xlane.f32.xlu0 %v372
  %v374 = vpop.xlane.xlu0 %373
  %v375 = vadd.f32 %v374, %v142
  %377 = vset.pattern.permute.xlu0 7
  %378 = vperm.xlu0 %377, %v352
  %v379 = vpop.permute.xlu0 %378
  %v381 = vmul.f32 %v379, %v119
  %v382 = vsel %vm192, %v381, 0.0
  %v383 = vrot.slane %v382, 4
  %v384 = vadd.f32 %v382, %v383
  %v385 = vrot.slane %v384, 2
  %v386 = vadd.f32 %v384, %v385
  %v387 = vrot.slane %v386, 1
  %v388 = vadd.f32 %v386, %v387
  %v389 = vadd.f32 %v388, %v190
  %v390 = vlaneseq
  %v391 = vshrl.u32 %v390, 7
  %v392 = vsub.s32 0, %v391
  %v393 = vrot.slane %v389, %v392
  %v394 = vmul.f32 %v393, %v78
  %v395 = vsel %vm192, %v394, 0.0
  %396 = vadd.xlane.f32.xlu0 %v395
  %v397 = vpop.xlane.xlu0 %396
  %v398 = vadd.f32 %v397, %v142
  %400 = vset.pattern.permute.xlu0 8
  %401 = vperm.xlu0 %400, %v375
  %v402 = vpop.permute.xlu0 %401
  %v404 = vmul.f32 %v402, %v119
  %v405 = vsel %vm192, %v404, 0.0
  %v406 = vrot.slane %v405, 4
  %v407 = vadd.f32 %v405, %v406
  %v408 = vrot.slane %v407, 2
  %v409 = vadd.f32 %v407, %v408
  %v410 = vrot.slane %v409, 1
  %v411 = vadd.f32 %v409, %v410
  %v412 = vadd.f32 %v411, %v190
  %v413 = vlaneseq
  %v414 = vshrl.u32 %v413, 7
  %v415 = vsub.s32 1, %v414
  %v416 = vrot.slane %v412, %v415
  %v417 = vmul.f32 %v416, %v78
  %v418 = vsel %vm192, %v417, 0.0
  %419 = vadd.xlane.f32.xlu0 %v418
  %v420 = vpop.xlane.xlu0 %419
  %v421 = vadd.f32 %v420, %v142
  %423 = vset.pattern.permute.xlu0 9
  %424 = vperm.xlu0 %423, %v398
  %v425 = vpop.permute.xlu0 %424
  %v427 = vmul.f32 %v425, %v119
  %v428 = vsel %vm192, %v427, 0.0
  %v429 = vrot.slane %v428, 4
  %v430 = vadd.f32 %v428, %v429
  %v431 = vrot.slane %v430, 2
  %v432 = vadd.f32 %v430, %v431
  %v433 = vrot.slane %v432, 1
  %v434 = vadd.f32 %v432, %v433
  %v435 = vadd.f32 %v434, %v190
  %v436 = vlaneseq
  %v437 = vshrl.u32 %v436, 7
  %v438 = vsub.s32 2, %v437
  %v439 = vrot.slane %v435, %v438
  %v440 = vmul.f32 %v439, %v78
  %v441 = vsel %vm192, %v440, 0.0
  %442 = vadd.xlane.f32.xlu0 %v441
  %v443 = vpop.xlane.xlu0 %442
  %v444 = vadd.f32 %v443, %v142
  %446 = vset.pattern.permute.xlu0 10
  %447 = vperm.xlu0 %446, %v421
  %v448 = vpop.permute.xlu0 %447
  %v450 = vmul.f32 %v448, %v119
  %v451 = vsel %vm192, %v450, 0.0
  %v452 = vrot.slane %v451, 4
  %v453 = vadd.f32 %v451, %v452
  %v454 = vrot.slane %v453, 2
  %v455 = vadd.f32 %v453, %v454
  %v456 = vrot.slane %v455, 1
  %v457 = vadd.f32 %v455, %v456
  %v458 = vadd.f32 %v457, %v190
  %v459 = vlaneseq
  %v460 = vshrl.u32 %v459, 7
  %v461 = vsub.s32 3, %v460
  %v462 = vrot.slane %v458, %v461
  %v463 = vmul.f32 %v462, %v78
  %v464 = vsel %vm192, %v463, 0.0
  %465 = vadd.xlane.f32.xlu0 %v464
  %v466 = vpop.xlane.xlu0 %465
  %v467 = vadd.f32 %v466, %v142
  %469 = vset.pattern.permute.xlu0 11
  %470 = vperm.xlu0 %469, %v444
  %v471 = vpop.permute.xlu0 %470
  %v473 = vmul.f32 %v471, %v119
  %v474 = vsel %vm192, %v473, 0.0
  %v475 = vrot.slane %v474, 4
  %v476 = vadd.f32 %v474, %v475
  %v477 = vrot.slane %v476, 2
  %v478 = vadd.f32 %v476, %v477
  %v479 = vrot.slane %v478, 1
  %v480 = vadd.f32 %v478, %v479
  %v481 = vadd.f32 %v480, %v190
  %v482 = vlaneseq
  %v483 = vshrl.u32 %v482, 7
  %v484 = vsub.s32 4, %v483
  %v485 = vrot.slane %v481, %v484
  %v486 = vmul.f32 %v485, %v78
  %v487 = vsel %vm192, %v486, 0.0
  %488 = vadd.xlane.f32.xlu0 %v487
  %v489 = vpop.xlane.xlu0 %488
  %v490 = vadd.f32 %v489, %v142
  %492 = vset.pattern.permute.xlu0 12
  %493 = vperm.xlu0 %492, %v467
  %v494 = vpop.permute.xlu0 %493
  %v496 = vmul.f32 %v494, %v119
  %v497 = vsel %vm192, %v496, 0.0
  %v498 = vrot.slane %v497, 4
  %v499 = vadd.f32 %v497, %v498
  %v500 = vrot.slane %v499, 2
  %v501 = vadd.f32 %v499, %v500
  %v502 = vrot.slane %v501, 1
  %v503 = vadd.f32 %v501, %v502
  %v504 = vadd.f32 %v503, %v190
  %506 = vset.pattern.permute.xlu0 13
  %507 = vperm.xlu0 %506, %v490
  %v508 = vpop.permute.xlu0 %507
  %v510 = vmul.f32 %v508, %v119
  %v511 = vsel %vm192, %v510, 0.0
  %v512 = vrot.slane %v511, 4
  %v513 = vadd.f32 %v511, %v512
  %v514 = vrot.slane %v513, 2
  %v515 = vadd.f32 %v513, %v514
  %v516 = vrot.slane %v515, 1
  %v517 = vadd.f32 %v515, %v516
  %v518 = vadd.f32 %v517, %v190
  %v520 = vrot.slane %v205, 7
  %v523 = vrot.slane %v228, 7
  %v526 = vrot.slane %v251, 7
  %v529 = vrot.slane %v274, 7
  %v532 = vrot.slane %v297, 7
  %v535 = vrot.slane %v320, 7
  %v538 = vrot.slane %v343, 7
  %v541 = vrot.slane %v366, 7
  %v544 = vrot.slane %v389, 7
  %v547 = vrot.slane %v412, 7
  %v550 = vrot.slane %v435, 7
  %v553 = vrot.slane %v458, 7
  %v556 = vrot.slane %v481, 7
  %v559 = vrot.slane %v504, 7
  %v562 = vrot.slane %v518, 7
  %vm564 = vcmask 1040384
  %v565 = vsel %vm564, 0.0, %v520
  %vm566 = vcmask 1041408
  %v567 = vsel %vm566, %v565, %v523
  %vm568 = vcmask 1042432
  %v569 = vsel %vm568, %v567, %v526
  %vm570 = vcmask 1043456
  %v571 = vsel %vm570, %v569, %v529
  %vm572 = vcmask 1044480
  %v573 = vsel %vm572, %v571, %v532
  %vm574 = vcmask 1045504
  %v575 = vsel %vm574, %v573, %v535
  %vm576 = vcmask 1046528
  %v577 = vsel %vm576, %v575, %v538
  %v578 = vsel %vm564, %v541, %v544
  %v579 = vsel %vm566, %v578, %v547
  %v580 = vsel %vm568, %v579, %v550
  %v581 = vsel %vm570, %v580, %v553
  %v582 = vsel %vm572, %v581, %v556
  %v583 = vsel %vm574, %v582, %v559
  %v584 = vsel %vm576, %v583, %v562
  %v586 = vsel %vm192, %v577, 0
  %v589 = vsel %vm192, %v584, 0
  %591 = vmatprep.subr.mxu0 0.0
  %592 = vmatpush1.msra.mxu0 %v32
  %593 = vmatprep.subr.mxu0 0.0
  %594 = vmatpush1.msra.mxu0 0.0
  %595 = vmatprep.subr.mxu0 0.0
  %596 = vmatpush1.msra.mxu0 0.0
  %597 = vmatprep.subr.mxu0 0.0
  %598 = vmatpush1.msra.mxu0 0.0
  %599 = vmatprep.subr.mxu0 0.0
  %600 = vmatpush1.msra.mxu0 0.0
  %601 = vmatprep.subr.mxu0 0.0
  %602 = vmatpush1.msra.mxu0 0.0
  %603 = vmatprep.subr.mxu0 0.0
  %604 = vmatpush1.msra.mxu0 0.0
  %605 = vmatprep.subr.mxu0 0.0
  %606 = vmatpush1.msra.mxu0 0.0
  %607 = vmatprep.subr.mxu0 0.0
  %608 = vmatpush1.msra.mxu0 0.0
  %609 = vmatprep.subr.mxu0 0.0
  %610 = vmatpush1.msra.mxu0 0.0
  %611 = vmatprep.subr.mxu0 0.0
  %612 = vmatpush1.msra.mxu0 0.0
  %613 = vmatprep.subr.mxu0 0.0
  %614 = vmatpush1.msra.mxu0 0.0
  %615 = vmatprep.subr.mxu0 0.0
  %616 = vmatpush1.msra.mxu0 0.0
  %617 = vmatprep.subr.mxu0 0.0
  %618 = vmatpush1.msra.mxu0 0.0
  %619 = vmatprep.subr.mxu0 0.0
  %620 = vmatpush1.msra.mxu0 0.0
  %621 = vmatprep.subr.mxu0 0.0
  %622 = vmatpush1.msra.mxu0 0.0
  %623 = vmatprep.subr.mxu0 0.0
  %624 = vmatpush1.msra.mxu0 0.0
  %625 = vmatprep.subr.mxu0 0.0
  %626 = vmatpush1.msra.mxu0 0.0
  %627 = vmatprep.subr.mxu0 0.0
  %628 = vmatpush1.msra.mxu0 0.0
  %629 = vmatprep.subr.mxu0 0.0
  %630 = vmatpush1.msra.mxu0 0.0
  %631 = vmatprep.subr.mxu0 0.0
  %632 = vmatpush1.msra.mxu0 0.0
  %633 = vmatprep.subr.mxu0 0.0
  %634 = vmatpush1.msra.mxu0 0.0
  %635 = vmatprep.subr.mxu0 0.0
  %636 = vmatpush1.msra.mxu0 0.0
  %637 = vmatprep.subr.mxu0 0.0
  %638 = vmatpush1.msra.mxu0 0.0
  %639 = vmatprep.subr.mxu0 0.0
  %640 = vmatpush1.msra.mxu0 0.0
  %641 = vmatprep.subr.mxu0 0.0
  %642 = vmatpush1.msra.mxu0 0.0
  %643 = vmatprep.subr.mxu0 0.0
  %644 = vmatpush1.msra.mxu0 0.0
  %645 = vmatprep.subr.mxu0 0.0
  %646 = vmatpush1.msra.mxu0 0.0
  %647 = vmatprep.subr.mxu0 0.0
  %648 = vmatpush1.msra.mxu0 0.0
  %649 = vmatprep.subr.mxu0 0.0
  %650 = vmatpush1.msra.mxu0 0.0
  %651 = vmatprep.subr.mxu0 0.0
  %652 = vmatpush1.msra.mxu0 0.0
  %653 = vmatprep.subr.mxu0 0.0
  %654 = vmatpush1.msra.mxu0 0.0
  %655 = vmatprep.mubr.f32.mxu0 0.0
  %656 = vmatmul.mubr.f32.gmra.mrb[0].mxu0 %v586
  %v657 = vpop.f32.mrb[0].mxu0
  %v658 = vadd.f32 0.0, %v657
  %v659 = vpop.f32.mrb[0].mxu0
  %660 = vmatprep.mubr.f32.mxu0 0.0
  %661 = vmatmul.mubr.f32.gmra.mrb[0].mxu0 %v589
  %v662 = vpop.f32.mrb[0].mxu0
  %v663 = vadd.f32 0.0, %v662
  %v664 = vpop.f32.mrb[0].mxu0
  %665 = vdwg.mxu0
  %vm666 = vcmask 31744
  %667 = vst.msk [vmem:[%s8] sm:$0xff] %vm666, %v658
  %668 = vst.msk [vmem:[%s8 + $0x8] sm:$0xff] %vm666, %v663
  // Predicated region
  $region34: #{dspo_forward.1} parent=0 // pred_check
    _
  $region35: #{dspo_forward.1} parent=0 // pred_check_branch
    %670 = sbr.rel (0) target = $region37
  $region36: #{dspo_forward.1} parent=0 // pred_region
    _
  $region37: #{dspo_forward.1} parent=0 // pred_fallthru
    _
  // Predicated region
  $region38: #{dspo_forward.1} parent=0 // pred_check
    _
  $region39: #{dspo_forward.1} parent=0 // pred_check_branch
    %672 = sbr.rel (0) target = $region41
  $region40: #{dspo_forward.1} parent=0 // pred_region
    _
  $region41: #{dspo_forward.1} parent=0 // pred_fallthru
    _

</llo_original>
